<compile_context>
chip_gen: v6e
topology: v6e:2x2x1
jax: 0.10.0
libtpu: 0.0.40
codegen_flags: <defaults>
</compile_context>

<pallas_src>
import functools

import jax
import jax.numpy as jnp
from jax.experimental import pallas as pl
from jax.experimental.pallas import tpu as pltpu

_SUBLANE = 8
_LANE = 128
_MAX_ROW_TILE = 4096                 # large per-step DMA; VMEM budget caps it anyway
_FALLBACK_VMEM_BYTES = 64 << 20      # conservative (v7x physical VMEM per TC)


def _round_up(n, m):
    return ((n + m - 1) // m) * m


def _tpu_topology():
    """(vmem_capacity_bytes, tensorcores_per_chip) -- defensive, never raises."""
    vmem = _FALLBACK_VMEM_BYTES
    cores = 1
    try:
        info = pltpu.get_tpu_info()
        vmem = int(getattr(info, "vmem_capacity_bytes", vmem) or vmem)
        for attr in ("num_tensorcores", "tensorcores_per_chip", "num_cores",
                     "core_count"):
            v = getattr(info, attr, None)
            if v:
                cores = int(v)
                break
    except Exception:
        pass
    if cores == 1:
        try:
            kind = jax.devices()[0].device_kind.lower()
            if "v7" in kind or "7x" in kind:
                cores = 2
        except Exception:
            pass
    return vmem, cores


def _choose_row_tile(num_rows, d, in_itemsize, out_itemsize, vmem_budget,
                     num_cores):
    """Largest row tile fitting the VMEM budget (double-buffered I/O tiles plus
    the in-kernel f32 working copies), capped at _MAX_ROW_TILE. On 2-TC chips
    the grid is made even and load-balanced so both TensorCores get near-equal
    work; on 1-TC chips the grid stays a plain sequential loop (no forced split).
    """
    per_row_bytes = (2 * d * (in_itemsize + out_itemsize)   # double-buffered in+out
                     + 2 * d * 4)                           # f32 upcast intermediates
    tm = (vmem_budget // per_row_bytes) // _SUBLANE * _SUBLANE
    tm = max(_SUBLANE, min(_MAX_ROW_TILE, tm))
    tm = min(tm, _round_up(num_rows, _SUBLANE))
    if num_cores >= 2 and num_rows >= 2 * _SUBLANE:
        # Even number of near-equal blocks -> balanced "parallel" split over TCs.
        n_steps = _round_up(max(num_cores, pl.cdiv(num_rows, tm)), num_cores)
        tm = max(_SUBLANE, _round_up(pl.cdiv(num_rows, n_steps), _SUBLANE))
    return tm


def _rmsnorm_kernel(x_ref, w_ref, o_ref, *, eps, inv_d):
    # x_ref: (tm, D) tile, w_ref: (1, D), o_ref: (tm, D)
    xf = x_ref[...].astype(jnp.float32)                  # x.float()
    ss = jnp.sum(xf * xf, axis=-1, keepdims=True)        # row reduction (XLU slot)
    inv = jax.lax.rsqrt(ss * inv_d + eps)                # 1/D folded; rsqrt on EUP
    w = w_ref[...].astype(jnp.float32)
    # Re-upcast x at the second use site so a whole-tile f32 copy is not kept
    # live across the reduction (saves ~tm*D*4 B of VMEM; casts are free VPU
    # work under the HBM-bound stream).
    o_ref[...] = (x_ref[...].astype(jnp.float32) * inv * w).astype(o_ref.dtype)


def rmsnorm(x, weight, *, eps=1e-5, out_dtype=None):
    """RMSNorm over the last axis. x: (..., D); weight: (D,).

    out_dtype=None reproduces the torch forward exactly (float32 output for a
    float32 weight). For bf16 activations, pass out_dtype=x.dtype to halve the
    writeback bytes (~1.3-1.5x faster end-to-end; this kernel is HBM-bound).
    """
    orig_shape = x.shape
    d = orig_shape[-1]
    assert weight.shape == (d,), "weight must have shape (hidden,)"

    if out_dtype is None:
        # torch forward: x.float() * rsqrt(mean(x^2)+eps) * weight -> float32.
        out_dtype = jnp.result_type(jnp.float32, weight.dtype)
    out_dtype = jnp.dtype(out_dtype)

    x2d = x.reshape(-1, d)
    num_rows = x2d.shape[0]
    w2d = weight.reshape(1, d)

    # Pad the hidden axis to a lane multiple so output stores are unmasked,
    # lane-dense vst (no-op for ModernBert's 768/1152). Padded columns are
    # zero, contribute 0 to sum(x^2), and are sliced off the output; inv_d
    # keeps the original D so the mean is unchanged.
    d_pad = _round_up(d, _LANE)
    if d_pad != d:
        x2d = jnp.pad(x2d, ((0, 0), (0, d_pad - d)))
        w2d = jnp.pad(w2d, ((0, 0), (0, d_pad - d)))

    in_itemsize = jnp.dtype(x.dtype).itemsize
    w_itemsize = jnp.dtype(weight.dtype).itemsize

    vmem_cap, num_cores = _tpu_topology()
    vmem_budget = max(32 << 20, vmem_cap // 2)   # 32 MiB on v7x, 64 MiB on v5e/v6e

    tm = _choose_row_tile(num_rows, d_pad, in_itemsize, out_dtype.itemsize,
                          vmem_budget, num_cores)
    grid = (pl.cdiv(num_rows, tm),)

    # Scoped-VMEM limit from the real footprint: double-buffered x/out tiles,
    # the in-kernel f32 intermediates, the weight block, plus headroom.
    buf_bytes = (2 * tm * d_pad * (in_itemsize + out_dtype.itemsize)
                 + 2 * tm * d_pad * 4
                 + 2 * d_pad * w_itemsize)
    vmem_limit = min(int(buf_bytes + (8 << 20)), int(vmem_cap))

    kernel = functools.partial(_rmsnorm_kernel, eps=float(eps), inv_d=1.0 / d)

    out = pl.pallas_call(
        kernel,
        out_shape=jax.ShapeDtypeStruct((num_rows, d_pad), out_dtype),
        grid_spec=pltpu.PrefetchScalarGridSpec(
            num_scalar_prefetch=0,
            grid=grid,
            in_specs=[
                pl.BlockSpec((tm, d_pad), lambda i: (i, 0)),
                pl.BlockSpec((1, d_pad), lambda i: (0, 0)),  # weight reused each step
            ],
            out_specs=pl.BlockSpec((tm, d_pad), lambda i: (i, 0)),
        ),
        compiler_params=pltpu.CompilerParams(
            dimension_semantics=("parallel",),
            vmem_limit_bytes=vmem_limit,
        ),
    )(x2d, w2d)

    if d_pad != d:
        out = out[:, :d]
    return out.reshape(orig_shape)


if __name__ == "__main__":
    key = jax.random.PRNGKey(0)

    # 1) Small torch-faithful check (f32 in -> f32 out), odd D exercises the
    #    lane-padding path.
    batch, seq, hidden = 2, 8, 32
    x = jax.random.normal(key, (batch, seq, hidden), dtype=jnp.float32)
    weight = jnp.ones((hidden,), dtype=jnp.float32)   # nn.Parameter(torch.ones(dim))

    y = rmsnorm(x, weight, eps=1e-5)
    jax.block_until_ready(y)

    xf = x.astype(jnp.float32)
    ref = xf * jax.lax.rsqrt(jnp.mean(xf * xf, axis=-1, keepdims=True) + 1e-5)
    ref = ref * weight.astype(jnp.float32)
    assert y.shape == ref.shape, (y.shape, ref.shape)
    assert y.dtype == ref.dtype, (y.dtype, ref.dtype)
    assert jnp.allclose(y, ref, atol=1e-5, rtol=1e-5), "mismatch vs reference (f32)"

    # 2) bf16 fast path (lane-dense D, dtype-preserving output).
    xb = jax.random.normal(jax.random.fold_in(key, 1), (2, 8, 256),
                           dtype=jnp.bfloat16)
    wb = jnp.ones((256,), dtype=jnp.float32)
    yb = rmsnorm(xb, wb, eps=1e-5, out_dtype=jnp.bfloat16)
    jax.block_until_ready(yb)

    xbf = xb.astype(jnp.float32)
    refb = xbf * jax.lax.rsqrt(jnp.mean(xbf * xbf, axis=-1, keepdims=True) + 1e-5)
    refb = refb * wb
    assert yb.dtype == jnp.bfloat16, yb.dtype
    assert jnp.allclose(yb.astype(jnp.float32), refb, atol=2e-2, rtol=2e-2), \
        "mismatch vs reference (bf16)"

    print("KERNEL_OK")
</pallas_src>

<mosaic_0001>
module attributes {stable_mosaic.version = 11 : i64} {
  func.func @_rmsnorm_kernel(%arg0: i32, %arg1: memref<16x128xf32, #tpu.memory_space<vmem>>, %arg2: memref<1x128xf32, #tpu.memory_space<vmem>>, %arg3: memref<16x128xf32, #tpu.memory_space<vmem>>) attributes {dimension_semantics = [#tpu.dimension_semantics<parallel>], iteration_bounds = array<i64: 1>, scalar_prefetch = 0 : i64, scratch_operands = 0 : i64, tpu.core_type = #tpu.core_type<tc>, window_params = [{transform_indices = @transform_0, window_bounds = array<i64: 16, 128>}, {pipeline_mode = #tpu.pipeline_mode<synchronous>, transform_indices = @transform_1, window_bounds = array<i64: 1, 128>}, {transform_indices = @transform_2, window_bounds = array<i64: 16, 128>}]} {
    %c0 = arith.constant 0 : index
    %c0_0 = arith.constant 0 : index
    %0 = vector.load %arg1[%c0, %c0_0] : memref<16x128xf32, #tpu.memory_space<vmem>>, vector<16x128xf32>
    %1 = arith.mulf %0, %0 : vector<16x128xf32>
    %cst = arith.constant dense<0.000000e+00> : vector<16xf32>
    %2 = vector.multi_reduction <add>, %1, %cst [1] : vector<16x128xf32> to vector<16xf32>
    %3 = vector.shape_cast %2 : vector<16xf32> to vector<16x1xf32>
    %cst_1 = arith.constant 3.125000e-02 : f32
    %4 = vector.broadcast %cst_1 : f32 to vector<16x1xf32>
    %5 = arith.mulf %3, %4 : vector<16x1xf32>
    %cst_2 = arith.constant 9.99999974E-6 : f32
    %6 = vector.broadcast %cst_2 : f32 to vector<16x1xf32>
    %7 = arith.addf %5, %6 : vector<16x1xf32>
    %8 = math.rsqrt %7 : vector<16x1xf32>
    %c0_3 = arith.constant 0 : index
    %c0_4 = arith.constant 0 : index
    %9 = vector.load %arg2[%c0_3, %c0_4] : memref<1x128xf32, #tpu.memory_space<vmem>>, vector<1x128xf32>
    %c0_5 = arith.constant 0 : index
    %c0_6 = arith.constant 0 : index
    %10 = vector.load %arg1[%c0_5, %c0_6] : memref<16x128xf32, #tpu.memory_space<vmem>>, vector<16x128xf32>
    %11 = vector.broadcast %8 : vector<16x1xf32> to vector<16x128xf32>
    %12 = arith.mulf %10, %11 : vector<16x128xf32>
    %13 = vector.broadcast %9 : vector<1x128xf32> to vector<16x128xf32>
    %14 = arith.mulf %12, %13 : vector<16x128xf32>
    %c0_7 = arith.constant 0 : index
    %c0_8 = arith.constant 0 : index
    %15 = vector.load %arg3[%c0_7, %c0_8] : memref<16x128xf32, #tpu.memory_space<vmem>>, vector<16x128xf32>
    tpu.vector_store %arg3[%c0_7, %c0_8], %14 {strides = array<i32>} : memref<16x128xf32, #tpu.memory_space<vmem>>, vector<16x128xf32>,
    return
  }
  func.func @transform_0(%arg0: i32) -> (i32, i32) {
    %c0_i32 = arith.constant 0 : i32
    %c0_i32_0 = arith.constant 0 : i32
    return %arg0, %c0_i32 : i32, i32
  }
  func.func @transform_1(%arg0: i32) -> (i32, i32) {
    %c0_i32 = arith.constant 0 : i32
    %c0_i32_0 = arith.constant 0 : i32
    %c0_i32_1 = arith.constant 0 : i32
    return %c0_i32, %c0_i32_0 : i32, i32
  }
  func.func @transform_2(%arg0: i32) -> (i32, i32) {
    %c0_i32 = arith.constant 0 : i32
    %c0_i32_0 = arith.constant 0 : i32
    return %arg0, %c0_i32 : i32, i32
  }
}

</mosaic_0001>

<llo_original>
// kernel: tpu_custom_call.1
$region0: #{tpu_custom_call.1}
  #allocation0 [shape = 'u32[]', space=smem, size = 0x4, offset = 0x4, fixed_abs, tag = 'smem constant byte address 0x4 - core index']
  #allocation1 [shape = 'u32[144,128]{1,0:T(1,128)}', space=vmem, size = 0x12000, scoped, tag = 'internal scratch']
  %s0 = inlined_call_operand.hbm [shape: f32[16,128], index: 0, kind: input, shape index: {}]
  %s1 = inlined_call_operand.vmem [shape: f32[1,128], index: 1, kind: input, shape index: {}]
  %s2 = inlined_call_operand.hbm [shape: f32[16,128], index: 2, kind: output, shape index: {}]
  %s3 = sld [smem:[#allocation0]]
  $region22: #{tpu_custom_call.1} parent=0
    _
  %s5 = ssub.s32 1, %s3
  %s6 = scalar_select 0, %s5, %s3
  $region1: #{tpu_custom_call.1} parent=0
    #allocation2 [shape = 'u8[8192]{0}', space=vmem, size = 0x2000, scoped, tag = 'input window, operand 0, single buffered']
    #allocation3 [shape = 's32[1]{0}', space=sflag, size = 0x4, scoped, tag = 'scoped memory for tpu_custom_call.1']
    #allocation4 [shape = 's32[1]{0}', space=sflag, size = 0x4, scoped, tag = 'scoped memory for tpu_custom_call.1']
    #allocation5 [shape = 'u8[8192]{0}', space=vmem, size = 0x2000, scoped, tag = 'output window, operand 0, single buffered']
    %7 = vsyncpa [#allocation3], 0
    %8 = vsyncpa [#allocation4], 0
    // Predicated region
    $region2: #{tpu_custom_call.1} parent=1 // pred_check
      _
    $region3: #{tpu_custom_call.1} parent=1 // pred_check_branch
      %10 = sbr.rel (0) target = $region5
    $region4: #{tpu_custom_call.1} parent=1 // pred_region
      %s12 = ssub.s32 256, 256
      %13 = vsyncadd [#allocation3], %s12
      %s14 = sshll.u32 [#allocation2], 4
      %s15 = int_to_ptr.vmem [resolvable:$true] %s14
      %20 = dma.hbm_to_vmem [thread:$0]  %s0, 256, %s15, [#allocation3], 128, 128, 8
    $region5: #{tpu_custom_call.1} parent=1 // pred_fallthru
      _
    // Predicated region
    $region6: #{tpu_custom_call.1} parent=1 // pred_check
      _
    $region7: #{tpu_custom_call.1} parent=1 // pred_check_branch
      %22 = sbr.rel (0) target = $region9
    $region8: #{tpu_custom_call.1} parent=1 // pred_region
      _
    $region9: #{tpu_custom_call.1} parent=1 // pred_fallthru
      _
    // Predicated region
    $region10: #{tpu_custom_call.1} parent=1 // pred_check
      _
    $region11: #{tpu_custom_call.1} parent=1 // pred_check_branch
      %24 = sbr.rel (0) target = $region13
    $region12: #{tpu_custom_call.1} parent=1 // pred_region
      %25 = dma.done [#allocation3], 256
    $region13: #{tpu_custom_call.1} parent=1 // pred_fallthru
      _
    %v26 = vld [vmem:[#allocation2] sm:$0xff]
    %v27 = vld [vmem:[#allocation2 + $0x8] sm:$0xff]
    %v28 = vmul.f32 %v26, %v26
    %v29 = vmul.f32 %v27, %v27
    %30 = vadd.xlane.f32.xlu0 %v28
    %v31 = vpop.xlane.xlu0 %30
    %32 = vadd.xlane.f32.xlu0 %v29
    %v33 = vpop.xlane.xlu0 %32
    %v34 = vmul.f32 %v31, 0.03125
    %v35 = vmul.f32 %v33, 0.03125
    %v36 = vadd.f32 %v34, 1e-05
    %v37 = vadd.f32 %v35, 1e-05
    %v38 = vrsqrt.pop %v36
    %v39 = vrsqrt.pop %v37
    %v40 = vld [vmem:[%s1] sm:$0x1]
    %v41 = vmul.f32 %v26, %v38
    %v42 = vmul.f32 %v27, %v39
    %v44 = vlaneseq
    %v45 = vshrl.u32 %v44, 7
    %v46 = vsub.s32 0, %v45
    %v47 = vrot.slane %v40, %v46
    %v49 = vmul.f32 %v41, %v47
    %v50 = vmul.f32 %v42, %v47
    %51 = vst [vmem:[#allocation5] sm:$0xff] %v49
    %52 = vst [vmem:[#allocation5 + $0x8] sm:$0xff] %v50
    // Predicated region
    $region14: #{tpu_custom_call.1} parent=1 // pred_check
      _
    $region15: #{tpu_custom_call.1} parent=1 // pred_check_branch
      %54 = sbr.rel (0) target = $region17
    $region16: #{tpu_custom_call.1} parent=1 // pred_region
      %s56 = ssub.s32 256, 256
      %57 = vsyncadd [#allocation4], %s56
      %s58 = sshll.u32 [#allocation5], 4
      %s59 = int_to_ptr.vmem [resolvable:$true] %s58
      %64 = dma.vmem_to_hbm [thread:$0]  %s59, 256, %s2, [#allocation4], 128, 128, 8
    $region17: #{tpu_custom_call.1} parent=1 // pred_fallthru
      _
    // Predicated region
    $region18: #{tpu_custom_call.1} parent=1 // pred_check
      _
    $region19: #{tpu_custom_call.1} parent=1 // pred_check_branch
      %66 = sbr.rel (0) target = $region21
    $region20: #{tpu_custom_call.1} parent=1 // pred_region
      %67 = dma.done [#allocation4], 256
    $region21: #{tpu_custom_call.1} parent=1 // pred_fallthru
      _
    %68 = vsyncpa [#allocation3], 1
    %69 = vsyncpa [#allocation4], 1

</llo_original>
